<compile_context>
chip_gen: v5e
topology: v5e:2x2
jax: 0.10.0
libtpu: 0.0.40
codegen_flags: <defaults>
</compile_context>

<pallas_src>
import jax
import jax.numpy as jnp
from jax.experimental import pallas as pl
from jax.experimental.pallas import tpu as pltpu

HIDDEN_DIM = 256

# Tile-selection knobs (see perf review):
_TB_MAX = 1024          # large-batch tile size (amortizes per-step overhead)
_SPLIT_THRESHOLD = 512  # above this, force >= 2 grid steps so v7x megacore engages


def _round_up(x, m):
    return ((x + m - 1) // m) * m


def _mlp_kernel(x_ref, w1_ref, b1_ref, w2_ref, b2_ref, w3_ref, b3_ref, o_ref):
    # Layer 1: Linear (bf16 MXU operands, f32 accumulation) + bias/ReLU in f32 on VPU.
    x = x_ref[...].astype(jnp.bfloat16)
    h1 = jnp.dot(x, w1_ref[...], preferred_element_type=jnp.float32)
    h1 = jnp.maximum(h1 + b1_ref[...], 0.0)
    # Layer 2.
    h2 = jnp.dot(h1.astype(jnp.bfloat16), w2_ref[...],
                 preferred_element_type=jnp.float32)
    h2 = jnp.maximum(h2 + b2_ref[...], 0.0)
    # Layer 3 (logits, no activation).
    out = jnp.dot(h2.astype(jnp.bfloat16), w3_ref[...],
                  preferred_element_type=jnp.float32)
    o_ref[...] = (out + b3_ref[...]).astype(o_ref.dtype)


def prepare_params(params):
    """One-time conversion: bf16 matmul weights, (1, out) f32 biases.

    Do this once at init / load time, NOT per forward call."""
    return {
        "w1": params["w1"].astype(jnp.bfloat16),
        "b1": params["b1"].reshape(1, -1).astype(jnp.float32),
        "w2": params["w2"].astype(jnp.bfloat16),
        "b2": params["b2"].reshape(1, -1).astype(jnp.float32),
        "w3": params["w3"].astype(jnp.bfloat16),
        "b3": params["b3"].reshape(1, -1).astype(jnp.float32),
    }


def _pick_batch_tile(B):
    """Batch tile: full array for small B (grid=1, no padding, full-dim exemption
    from the (8,128) rule); for larger B pick a tile <= 1024 that yields >= 2 grid
    steps so v7x's two TensorCores both get work. Ragged last block is handled by
    Pallas (reads past the end are garbage but rows are independent and writes are
    clipped to the real output extent)."""
    if B <= _SPLIT_THRESHOLD:
        return B
    return min(_TB_MAX, _round_up(pl.cdiv(B, 2), 8))


def skill_discriminator_forward(state, prepared):
    """state: (B, state_dim) float32. prepared: output of prepare_params()."""
    w1, b1 = prepared["w1"], prepared["b1"]
    w2, b2 = prepared["w2"], prepared["b2"]
    w3, b3 = prepared["w3"], prepared["b3"]

    B, S = state.shape
    H = w1.shape[1]
    Z = w3.shape[1]

    TB = _pick_batch_tile(B)
    grid = (pl.cdiv(B, TB),)

    x = state.astype(jnp.float32)

    flops = 2 * B * (S * H + H * H + H * Z)
    bytes_accessed = (
        x.size * 4
        + (w1.size + w2.size + w3.size) * 2          # bf16 weights
        + (b1.size + b2.size + b3.size) * 4          # f32 biases
        + B * Z * 4                                  # f32 output
    )

    out = pl.pallas_call(
        _mlp_kernel,
        out_shape=jax.ShapeDtypeStruct((B, Z), jnp.float32),
        grid=grid,
        in_specs=[
            pl.BlockSpec((TB, S), lambda i: (i, 0)),   # x: tiled over batch
            pl.BlockSpec((S, H), lambda i: (0, 0)),    # w1: VMEM-resident
            pl.BlockSpec((1, H), lambda i: (0, 0)),    # b1
            pl.BlockSpec((H, H), lambda i: (0, 0)),    # w2: VMEM-resident
            pl.BlockSpec((1, H), lambda i: (0, 0)),    # b2
            pl.BlockSpec((H, Z), lambda i: (0, 0)),    # w3: VMEM-resident
            pl.BlockSpec((1, Z), lambda i: (0, 0)),    # b3
        ],
        out_specs=pl.BlockSpec((TB, Z), lambda i: (i, 0)),
        compiler_params=pltpu.CompilerParams(
            dimension_semantics=("parallel",),         # both v7x TCs for big B
        ),
        cost_estimate=pl.CostEstimate(
            flops=flops, transcendentals=0, bytes_accessed=bytes_accessed),
    )(x, w1, b1, w2, b2, w3, b3)

    return out


def init_params(key, state_dim, skill_dim):
    """Deterministic init mimicking torch.nn.Linear default (uniform +/- 1/sqrt(fan_in)).
    Weights are stored transposed as (in, out)."""
    ks = jax.random.split(key, 6)

    def linear(kw, kb, fan_in, fan_out):
        bound = 1.0 / jnp.sqrt(fan_in)
        w = jax.random.uniform(kw, (fan_in, fan_out), jnp.float32, -bound, bound)
        b = jax.random.uniform(kb, (fan_out,), jnp.float32, -bound, bound)
        return w, b

    w1, b1 = linear(ks[0], ks[1], state_dim, HIDDEN_DIM)
    w2, b2 = linear(ks[2], ks[3], HIDDEN_DIM, HIDDEN_DIM)
    w3, b3 = linear(ks[4], ks[5], HIDDEN_DIM, skill_dim)
    return {"w1": w1, "b1": b1, "w2": w2, "b2": b2, "w3": w3, "b3": b3}


def _reference_forward_f32(state, params):
    h1 = jnp.maximum(state @ params["w1"] + params["b1"], 0.0)
    h2 = jnp.maximum(h1 @ params["w2"] + params["b2"], 0.0)
    return h2 @ params["w3"] + params["b3"]


def _reference_forward_bf16(state, prepared):
    # Mimics the kernel: bf16 matmul operands, f32 products/accumulation.
    def q(a):
        return a.astype(jnp.bfloat16).astype(jnp.float32)

    h1 = jnp.maximum(q(state) @ q(prepared["w1"]) + prepared["b1"], 0.0)
    h2 = jnp.maximum(q(h1) @ q(prepared["w2"]) + prepared["b2"], 0.0)
    return q(h2) @ q(prepared["w3"]) + prepared["b3"]


if __name__ == "__main__":
    key = jax.random.PRNGKey(0)
    k_param, k_state, k_big = jax.random.split(key, 3)

    state_dim = 16
    skill_dim = 8

    params = init_params(k_param, state_dim, skill_dim)
    prepared = prepare_params(params)   # one-time weight prep (bf16, (1,out) biases)

    forward = jax.jit(skill_discriminator_forward)

    # --- Small test case (B=2): single full-array block, grid=(1,). ---
    batch = 2
    state = jax.random.normal(k_state, (batch, state_dim), jnp.float32)
    out = jax.block_until_ready(forward(state, prepared))
    assert out.shape == (batch, skill_dim), out.shape

    ref_bf16 = _reference_forward_bf16(state, prepared)
    assert jnp.allclose(out, ref_bf16, atol=2e-3, rtol=2e-3), "mismatch vs bf16 reference (small)"
    ref_f32 = _reference_forward_f32(state, params)
    assert jnp.allclose(out, ref_f32, atol=5e-2, rtol=5e-2), "mismatch vs f32 reference (small)"

    # --- Larger ragged case (B=600): TB=304, grid=(2,), exercises the unpadded
    #     multi-step / ragged-last-block path and the megacore split. ---
    batch_big = 600
    state_big = jax.random.normal(k_big, (batch_big, state_dim), jnp.float32)
    out_big = jax.block_until_ready(forward(state_big, prepared))
    assert out_big.shape == (batch_big, skill_dim), out_big.shape

    ref_bf16_big = _reference_forward_bf16(state_big, prepared)
    assert jnp.allclose(out_big, ref_bf16_big, atol=2e-3, rtol=2e-3), "mismatch vs bf16 reference (big)"
    ref_f32_big = _reference_forward_f32(state_big, params)
    assert jnp.allclose(out_big, ref_f32_big, atol=5e-2, rtol=5e-2), "mismatch vs f32 reference (big)"

    print("KERNEL_OK")
</pallas_src>

<mosaic_0001>
module attributes {stable_mosaic.version = 11 : i64} {
  func.func @_mlp_kernel(%arg0: i32, %arg1: memref<2x16xf32, #tpu.memory_space<vmem>>, %arg2: memref<16x256xbf16, #tpu.memory_space<vmem>>, %arg3: memref<1x256xf32, #tpu.memory_space<vmem>>, %arg4: memref<256x256xbf16, #tpu.memory_space<vmem>>, %arg5: memref<1x256xf32, #tpu.memory_space<vmem>>, %arg6: memref<256x8xbf16, #tpu.memory_space<vmem>>, %arg7: memref<1x8xf32, #tpu.memory_space<vmem>>, %arg8: memref<2x8xf32, #tpu.memory_space<vmem>>) attributes {dimension_semantics = [#tpu.dimension_semantics<parallel>], iteration_bounds = array<i64: 1>, scalar_prefetch = 0 : i64, scratch_operands = 0 : i64, tpu.core_type = #tpu.core_type<tc>, window_params = [{transform_indices = @transform_0, window_bounds = array<i64: 2, 16>}, {pipeline_mode = #tpu.pipeline_mode<synchronous>, transform_indices = @transform_1, window_bounds = array<i64: 16, 256>}, {pipeline_mode = #tpu.pipeline_mode<synchronous>, transform_indices = @transform_2, window_bounds = array<i64: 1, 256>}, {pipeline_mode = #tpu.pipeline_mode<synchronous>, transform_indices = @transform_3, window_bounds = array<i64: 256, 256>}, {pipeline_mode = #tpu.pipeline_mode<synchronous>, transform_indices = @transform_4, window_bounds = array<i64: 1, 256>}, {pipeline_mode = #tpu.pipeline_mode<synchronous>, transform_indices = @transform_5, window_bounds = array<i64: 256, 8>}, {pipeline_mode = #tpu.pipeline_mode<synchronous>, transform_indices = @transform_6, window_bounds = array<i64: 1, 8>}, {transform_indices = @transform_7, window_bounds = array<i64: 2, 8>}]} {
    %c0 = arith.constant 0 : index
    %c0_0 = arith.constant 0 : index
    %0 = vector.load %arg1[%c0, %c0_0] : memref<2x16xf32, #tpu.memory_space<vmem>>, vector<2x16xf32>
    %1 = arith.truncf %0 : vector<2x16xf32> to vector<2x16xbf16>
    %c0_1 = arith.constant 0 : index
    %c0_2 = arith.constant 0 : index
    %2 = vector.load %arg2[%c0_1, %c0_2] : memref<16x256xbf16, #tpu.memory_space<vmem>>, vector<16x256xbf16>
    %cst = arith.constant dense<0.000000e+00> : vector<2x256xf32>
    %3 = tpu.matmul %1, %2, %cst {dimension_numbers = #tpu.dot_dimension_numbers<[1], [0], [0], [1], [0, 0, 1, 1], [], []>} : vector<2x16xbf16>, vector<16x256xbf16>, vector<2x256xf32> -> vector<2x256xf32>
    %c0_3 = arith.constant 0 : index
    %c0_4 = arith.constant 0 : index
    %4 = vector.load %arg3[%c0_3, %c0_4] : memref<1x256xf32, #tpu.memory_space<vmem>>, vector<1x256xf32>
    %5 = vector.broadcast %4 : vector<1x256xf32> to vector<2x256xf32>
    %6 = arith.addf %3, %5 : vector<2x256xf32>
    %cst_5 = arith.constant 0.000000e+00 : f32
    %7 = vector.broadcast %cst_5 : f32 to vector<2x256xf32>
    %8 = arith.maximumf %6, %7 : vector<2x256xf32>
    %9 = arith.truncf %8 : vector<2x256xf32> to vector<2x256xbf16>
    %c0_6 = arith.constant 0 : index
    %c0_7 = arith.constant 0 : index
    %10 = vector.load %arg4[%c0_6, %c0_7] : memref<256x256xbf16, #tpu.memory_space<vmem>>, vector<256x256xbf16>
    %cst_8 = arith.constant dense<0.000000e+00> : vector<2x256xf32>
    %11 = tpu.matmul %9, %10, %cst_8 {dimension_numbers = #tpu.dot_dimension_numbers<[1], [0], [0], [1], [0, 0, 1, 1], [], []>} : vector<2x256xbf16>, vector<256x256xbf16>, vector<2x256xf32> -> vector<2x256xf32>
    %c0_9 = arith.constant 0 : index
    %c0_10 = arith.constant 0 : index
    %12 = vector.load %arg5[%c0_9, %c0_10] : memref<1x256xf32, #tpu.memory_space<vmem>>, vector<1x256xf32>
    %13 = vector.broadcast %12 : vector<1x256xf32> to vector<2x256xf32>
    %14 = arith.addf %11, %13 : vector<2x256xf32>
    %cst_11 = arith.constant 0.000000e+00 : f32
    %15 = vector.broadcast %cst_11 : f32 to vector<2x256xf32>
    %16 = arith.maximumf %14, %15 : vector<2x256xf32>
    %17 = arith.truncf %16 : vector<2x256xf32> to vector<2x256xbf16>
    %c0_12 = arith.constant 0 : index
    %c0_13 = arith.constant 0 : index
    %18 = vector.load %arg6[%c0_12, %c0_13] : memref<256x8xbf16, #tpu.memory_space<vmem>>, vector<256x8xbf16>
    %cst_14 = arith.constant dense<0.000000e+00> : vector<2x8xf32>
    %19 = tpu.matmul %17, %18, %cst_14 {dimension_numbers = #tpu.dot_dimension_numbers<[1], [0], [0], [1], [0, 0, 1, 1], [], []>} : vector<2x256xbf16>, vector<256x8xbf16>, vector<2x8xf32> -> vector<2x8xf32>
    %c0_15 = arith.constant 0 : index
    %c0_16 = arith.constant 0 : index
    %20 = vector.load %arg7[%c0_15, %c0_16] : memref<1x8xf32, #tpu.memory_space<vmem>>, vector<1x8xf32>
    %21 = vector.broadcast %20 : vector<1x8xf32> to vector<2x8xf32>
    %22 = arith.addf %19, %21 : vector<2x8xf32>
    %c0_17 = arith.constant 0 : index
    %c0_18 = arith.constant 0 : index
    %23 = vector.load %arg8[%c0_17, %c0_18] : memref<2x8xf32, #tpu.memory_space<vmem>>, vector<2x8xf32>
    tpu.vector_store %arg8[%c0_17, %c0_18], %22 {strides = array<i32>} : memref<2x8xf32, #tpu.memory_space<vmem>>, vector<2x8xf32>,
    return
  }
  func.func @transform_0(%arg0: i32) -> (i32, i32) {
    %c0_i32 = arith.constant 0 : i32
    %c0_i32_0 = arith.constant 0 : i32
    return %arg0, %c0_i32 : i32, i32
  }
  func.func @transform_1(%arg0: i32) -> (i32, i32) {
    %c0_i32 = arith.constant 0 : i32
    %c0_i32_0 = arith.constant 0 : i32
    %c0_i32_1 = arith.constant 0 : i32
    return %c0_i32, %c0_i32_0 : i32, i32
  }
  func.func @transform_2(%arg0: i32) -> (i32, i32) {
    %c0_i32 = arith.constant 0 : i32
    %c0_i32_0 = arith.constant 0 : i32
    %c0_i32_1 = arith.constant 0 : i32
    return %c0_i32, %c0_i32_0 : i32, i32
  }
  func.func @transform_3(%arg0: i32) -> (i32, i32) {
    %c0_i32 = arith.constant 0 : i32
    %c0_i32_0 = arith.constant 0 : i32
    %c0_i32_1 = arith.constant 0 : i32
    return %c0_i32, %c0_i32_0 : i32, i32
  }
  func.func @transform_4(%arg0: i32) -> (i32, i32) {
    %c0_i32 = arith.constant 0 : i32
    %c0_i32_0 = arith.constant 0 : i32
    %c0_i32_1 = arith.constant 0 : i32
    return %c0_i32, %c0_i32_0 : i32, i32
  }
  func.func @transform_5(%arg0: i32) -> (i32, i32) {
    %c0_i32 = arith.constant 0 : i32
    %c0_i32_0 = arith.constant 0 : i32
    %c0_i32_1 = arith.constant 0 : i32
    return %c0_i32, %c0_i32_0 : i32, i32
  }
  func.func @transform_6(%arg0: i32) -> (i32, i32) {
    %c0_i32 = arith.constant 0 : i32
    %c0_i32_0 = arith.constant 0 : i32
    %c0_i32_1 = arith.constant 0 : i32
    return %c0_i32, %c0_i32_0 : i32, i32
  }
  func.func @transform_7(%arg0: i32) -> (i32, i32) {
    %c0_i32 = arith.constant 0 : i32
    %c0_i32_0 = arith.constant 0 : i32
    return %arg0, %c0_i32 : i32, i32
  }
}

</mosaic_0001>

<llo_original>
// kernel: skill_discriminator_forward.1
$region0: #{skill_discriminator_forward.1}
  #allocation0 [shape = 'u32[]', space=smem, size = 0x4, offset = 0x4, fixed_abs, tag = 'smem constant byte address 0x4 - core index']
  #allocation1 [shape = 'u32[72,128]{1,0:T(1,128)}', space=vmem, size = 0x9000, scoped, tag = 'internal scratch']
  %s0 = inlined_call_operand.vmem [shape: f32[2,16], index: 0, kind: input, shape index: {}]
  %s1 = inlined_call_operand.vmem [shape: bf16[16,256], index: 1, kind: input, shape index: {}]
  %s2 = inlined_call_operand.vmem [shape: f32[1,256], index: 2, kind: input, shape index: {}]
  %s3 = inlined_call_operand.hbm [shape: bf16[256,256], index: 3, kind: input, shape index: {}]
  %s4 = inlined_call_operand.vmem [shape: f32[1,256], index: 4, kind: input, shape index: {}]
  %s5 = inlined_call_operand.vmem [shape: bf16[256,8], index: 5, kind: input, shape index: {}]
  %s6 = inlined_call_operand.vmem [shape: f32[1,8], index: 6, kind: input, shape index: {}]
  %s7 = inlined_call_operand.hbm [shape: f32[2,8], index: 7, kind: output, shape index: {}]
  %s8 = sld [smem:[#allocation0]]
  $region42: #{skill_discriminator_forward.1} parent=0
    _
  %s10 = ssub.s32 1, %s8
  %s11 = scalar_select 0, %s10, %s8
  $region1: #{skill_discriminator_forward.1} parent=0
    #allocation2 [shape = 'u8[131072]{0}', space=vmem, size = 0x20000, scoped, tag = 'input window, operand 3, single buffered']
    #allocation3 [shape = 's32[1]{0}', space=sflag, size = 0x4, scoped, tag = 'scoped memory for skill_discriminator_forward.1']
    #allocation4 [shape = 's32[1]{0}', space=sflag, size = 0x4, scoped, tag = 'scoped memory for skill_discriminator_forward.1']
    #allocation5 [shape = 'u8[1024]{0}', space=vmem, size = 0x400, scoped, tag = 'output window, operand 0, single buffered']
    %12 = vsyncpa [#allocation3], 0
    %13 = vsyncpa [#allocation4], 0
    // Predicated region
    $region2: #{skill_discriminator_forward.1} parent=1 // pred_check
      _
    $region3: #{skill_discriminator_forward.1} parent=1 // pred_check_branch
      %15 = sbr.rel (0) target = $region5
    $region4: #{skill_discriminator_forward.1} parent=1 // pred_region
      _
    $region5: #{skill_discriminator_forward.1} parent=1 // pred_fallthru
      _
    // Predicated region
    $region6: #{skill_discriminator_forward.1} parent=1 // pred_check
      _
    $region7: #{skill_discriminator_forward.1} parent=1 // pred_check_branch
      %17 = sbr.rel (0) target = $region9
    $region8: #{skill_discriminator_forward.1} parent=1 // pred_region
      _
    $region9: #{skill_discriminator_forward.1} parent=1 // pred_fallthru
      _
    // Predicated region
    $region10: #{skill_discriminator_forward.1} parent=1 // pred_check
      _
    $region11: #{skill_discriminator_forward.1} parent=1 // pred_check_branch
      %19 = sbr.rel (0) target = $region13
    $region12: #{skill_discriminator_forward.1} parent=1 // pred_region
      _
    $region13: #{skill_discriminator_forward.1} parent=1 // pred_fallthru
      _
    // Predicated region
    $region14: #{skill_discriminator_forward.1} parent=1 // pred_check
      _
    $region15: #{skill_discriminator_forward.1} parent=1 // pred_check_branch
      %21 = sbr.rel (0) target = $region17
    $region16: #{skill_discriminator_forward.1} parent=1 // pred_region
      %23 = vsyncadd [#allocation3], 0
      %s24 = sshll.u32 %s3, 4
      %s25 = int_to_ptr.hbm [resolvable:$true] %s24
      %s26 = sshll.u32 [#allocation2], 4
      %s27 = int_to_ptr.vmem [resolvable:$true] %s26
      %32 = dma.hbm_to_vmem [thread:$0]  %s25, 4096, %s27, [#allocation3], 128, 128, 8
    $region17: #{skill_discriminator_forward.1} parent=1 // pred_fallthru
      _
    // Predicated region
    $region18: #{skill_discriminator_forward.1} parent=1 // pred_check
      _
    $region19: #{skill_discriminator_forward.1} parent=1 // pred_check_branch
      %34 = sbr.rel (0) target = $region21
    $region20: #{skill_discriminator_forward.1} parent=1 // pred_region
      _
    $region21: #{skill_discriminator_forward.1} parent=1 // pred_fallthru
      _
    // Predicated region
    $region22: #{skill_discriminator_forward.1} parent=1 // pred_check
      _
    $region23: #{skill_discriminator_forward.1} parent=1 // pred_check_branch
      %36 = sbr.rel (0) target = $region25
    $region24: #{skill_discriminator_forward.1} parent=1 // pred_region
      _
    $region25: #{skill_discriminator_forward.1} parent=1 // pred_fallthru
      _
    // Predicated region
    $region26: #{skill_discriminator_forward.1} parent=1 // pred_check
      _
    $region27: #{skill_discriminator_forward.1} parent=1 // pred_check_branch
      %38 = sbr.rel (0) target = $region29
    $region28: #{skill_discriminator_forward.1} parent=1 // pred_region
      _
    $region29: #{skill_discriminator_forward.1} parent=1 // pred_fallthru
      _
    // Predicated region
    $region30: #{skill_discriminator_forward.1} parent=1 // pred_check
      _
    $region31: #{skill_discriminator_forward.1} parent=1 // pred_check_branch
      %40 = sbr.rel (0) target = $region33
    $region32: #{skill_discriminator_forward.1} parent=1 // pred_region
      %42 = dma.done [#allocation3], 4096
    $region33: #{skill_discriminator_forward.1} parent=1 // pred_fallthru
      _
    %v44 = vld [vmem:[%s0] sm:$0x3]
    %v45 = vpack.c.bf16 %v44, %v44
    %v46 = vld [vmem:[%s1] sm:$0xff]
    %v47 = vld [vmem:[%s1 + $0x8] sm:$0xff]
    %v48 = vld [vmem:[%s2] sm:$0x3]
    %v50 = vperm.slane %v48, 0
    %v51 = vperm.slane %v48, 1
    %v56 = vunpack.c.l.b16 %v46
    %v57 = vunpack.c.h.b16 %v46
    %v58 = vunpack.c.l.b16 %v47
    %v59 = vunpack.c.h.b16 %v47
    %v60 = vpack.c.b16 %v58, %v56
    %v61 = vpack.c.b16 %v59, %v57
    %vm64 = vcmask 130048
    %v66 = vsel %vm64, %v45, 0
    %68 = vmatpush.bf16.msra.mxu0 0
    %69 = vmatpush.bf16.msra.mxu0 0
    %70 = vmatpush.bf16.msra.mxu0 0
    %71 = vmatpush.bf16.msra.mxu0 0
    %72 = vmatpush.bf16.msra.mxu0 0
    %73 = vmatpush.bf16.msra.mxu0 0
    %74 = vmatpush.bf16.msra.mxu0 0
    %75 = vmatpush.bf16.msra.mxu0 %v60
    %76 = vmatmul.bf16.gmra.mxu0 %v66
    %v77 = vpop.f32.mrf.mxu0
    %v78 = vadd.f32 %v50, %v77
    %v79 = vpop.f32.mrf.mxu0
    %80 = vdwg.mxu0
    %81 = vmatpush.bf16.msra.mxu0 0
    %82 = vmatpush.bf16.msra.mxu0 0
    %83 = vmatpush.bf16.msra.mxu0 0
    %84 = vmatpush.bf16.msra.mxu0 0
    %85 = vmatpush.bf16.msra.mxu0 0
    %86 = vmatpush.bf16.msra.mxu0 0
    %87 = vmatpush.bf16.msra.mxu0 0
    %88 = vmatpush.bf16.msra.mxu0 %v61
    %89 = vmatmul.bf16.gmra.mxu0 %v66
    %v90 = vpop.f32.mrf.mxu0
    %v91 = vadd.f32 %v51, %v90
    %v92 = vpop.f32.mrf.mxu0
    %93 = vdwg.mxu0
    %v94 = vmax.f32 %v78, 0.0
    %v95 = vmax.f32 %v91, 0.0
    %v96 = vpack.c.bf16 %v94, %v94
    %v97 = vpack.c.bf16 %v95, %v95
    %v98 = vld [vmem:[#allocation2] sm:$0xff]
    %v99 = vld [vmem:[#allocation2 + $0x8] sm:$0xff]
    %v100 = vld [vmem:[#allocation2 + $0x10] sm:$0xff]
    %v101 = vld [vmem:[#allocation2 + $0x18] sm:$0xff]
    %v102 = vld [vmem:[#allocation2 + $0x20] sm:$0xff]
    %v103 = vld [vmem:[#allocation2 + $0x28] sm:$0xff]
    %v104 = vld [vmem:[#allocation2 + $0x30] sm:$0xff]
    %v105 = vld [vmem:[#allocation2 + $0x38] sm:$0xff]
    %v106 = vld [vmem:[#allocation2 + $0x40] sm:$0xff]
    %v107 = vld [vmem:[#allocation2 + $0x48] sm:$0xff]
    %v108 = vld [vmem:[#allocation2 + $0x50] sm:$0xff]
    %v109 = vld [vmem:[#allocation2 + $0x58] sm:$0xff]
    %v110 = vld [vmem:[#allocation2 + $0x60] sm:$0xff]
    %v111 = vld [vmem:[#allocation2 + $0x68] sm:$0xff]
    %v112 = vld [vmem:[#allocation2 + $0x70] sm:$0xff]
    %v113 = vld [vmem:[#allocation2 + $0x78] sm:$0xff]
    %v114 = vld [vmem:[#allocation2 + $0x80] sm:$0xff]
    %v115 = vld [vmem:[#allocation2 + $0x88] sm:$0xff]
    %v116 = vld [vmem:[#allocation2 + $0x90] sm:$0xff]
    %v117 = vld [vmem:[#allocation2 + $0x98] sm:$0xff]
    %v118 = vld [vmem:[#allocation2 + $0xa0] sm:$0xff]
    %v119 = vld [vmem:[#allocation2 + $0xa8] sm:$0xff]
    %v120 = vld [vmem:[#allocation2 + $0xb0] sm:$0xff]
    %v121 = vld [vmem:[#allocation2 + $0xb8] sm:$0xff]
    %v122 = vld [vmem:[#allocation2 + $0xc0] sm:$0xff]
    %v123 = vld [vmem:[#allocation2 + $0xc8] sm:$0xff]
    %v124 = vld [vmem:[#allocation2 + $0xd0] sm:$0xff]
    %v125 = vld [vmem:[#allocation2 + $0xd8] sm:$0xff]
    %v126 = vld [vmem:[#allocation2 + $0xe0] sm:$0xff]
    %v127 = vld [vmem:[#allocation2 + $0xe8] sm:$0xff]
    %v128 = vld [vmem:[#allocation2 + $0xf0] sm:$0xff]
    %v129 = vld [vmem:[#allocation2 + $0xf8] sm:$0xff]
    %v130 = vld [vmem:[%s4] sm:$0x3]
    %v132 = vperm.slane %v130, 0
    %v133 = vperm.slane %v130, 1
    %v168 = vunpack.c.l.b16 %v98
    %v169 = vunpack.c.h.b16 %v98
    %v170 = vunpack.c.l.b16 %v99
    %v171 = vunpack.c.h.b16 %v99
    %v172 = vunpack.c.l.b16 %v100
    %v173 = vunpack.c.h.b16 %v100
    %v174 = vunpack.c.l.b16 %v101
    %v175 = vunpack.c.h.b16 %v101
    %v176 = vunpack.c.l.b16 %v102
    %v177 = vunpack.c.h.b16 %v102
    %v178 = vunpack.c.l.b16 %v103
    %v179 = vunpack.c.h.b16 %v103
    %v180 = vunpack.c.l.b16 %v104
    %v181 = vunpack.c.h.b16 %v104
    %v182 = vunpack.c.l.b16 %v105
    %v183 = vunpack.c.h.b16 %v105
    %v184 = vunpack.c.l.b16 %v106
    %v185 = vunpack.c.h.b16 %v106
    %v186 = vunpack.c.l.b16 %v107
    %v187 = vunpack.c.h.b16 %v107
    %v188 = vunpack.c.l.b16 %v108
    %v189 = vunpack.c.h.b16 %v108
    %v190 = vunpack.c.l.b16 %v109
    %v191 = vunpack.c.h.b16 %v109
    %v192 = vunpack.c.l.b16 %v110
    %v193 = vunpack.c.h.b16 %v110
    %v194 = vunpack.c.l.b16 %v111
    %v195 = vunpack.c.h.b16 %v111
    %v196 = vunpack.c.l.b16 %v112
    %v197 = vunpack.c.h.b16 %v112
    %v198 = vunpack.c.l.b16 %v113
    %v199 = vunpack.c.h.b16 %v113
    %v200 = vunpack.c.l.b16 %v114
    %v201 = vunpack.c.h.b16 %v114
    %v202 = vunpack.c.l.b16 %v115
    %v203 = vunpack.c.h.b16 %v115
    %v204 = vunpack.c.l.b16 %v116
    %v205 = vunpack.c.h.b16 %v116
    %v206 = vunpack.c.l.b16 %v117
    %v207 = vunpack.c.h.b16 %v117
    %v208 = vunpack.c.l.b16 %v118
    %v209 = vunpack.c.h.b16 %v118
    %v210 = vunpack.c.l.b16 %v119
    %v211 = vunpack.c.h.b16 %v119
    %v212 = vunpack.c.l.b16 %v120
    %v213 = vunpack.c.h.b16 %v120
    %v214 = vunpack.c.l.b16 %v121
    %v215 = vunpack.c.h.b16 %v121
    %v216 = vunpack.c.l.b16 %v122
    %v217 = vunpack.c.h.b16 %v122
    %v218 = vunpack.c.l.b16 %v123
    %v219 = vunpack.c.h.b16 %v123
    %v220 = vunpack.c.l.b16 %v124
    %v221 = vunpack.c.h.b16 %v124
    %v222 = vunpack.c.l.b16 %v125
    %v223 = vunpack.c.h.b16 %v125
    %v224 = vunpack.c.l.b16 %v126
    %v225 = vunpack.c.h.b16 %v126
    %v226 = vunpack.c.l.b16 %v127
    %v227 = vunpack.c.h.b16 %v127
    %v228 = vunpack.c.l.b16 %v128
    %v229 = vunpack.c.h.b16 %v128
    %v230 = vunpack.c.l.b16 %v129
    %v231 = vunpack.c.h.b16 %v129
    %v232 = vpack.c.b16 %v170, %v168
    %v233 = vpack.c.b16 %v171, %v169
    %v234 = vpack.c.b16 %v174, %v172
    %v235 = vpack.c.b16 %v175, %v173
    %v236 = vpack.c.b16 %v178, %v176
    %v237 = vpack.c.b16 %v179, %v177
    %v238 = vpack.c.b16 %v182, %v180
    %v239 = vpack.c.b16 %v183, %v181
    %v240 = vpack.c.b16 %v186, %v184
    %v241 = vpack.c.b16 %v187, %v185
    %v242 = vpack.c.b16 %v190, %v188
    %v243 = vpack.c.b16 %v191, %v189
    %v244 = vpack.c.b16 %v194, %v192
    %v245 = vpack.c.b16 %v195, %v193
    %v246 = vpack.c.b16 %v198, %v196
    %v247 = vpack.c.b16 %v199, %v197
    %v248 = vpack.c.b16 %v202, %v200
    %v249 = vpack.c.b16 %v203, %v201
    %v250 = vpack.c.b16 %v206, %v204
    %v251 = vpack.c.b16 %v207, %v205
    %v252 = vpack.c.b16 %v210, %v208
    %v253 = vpack.c.b16 %v211, %v209
    %v254 = vpack.c.b16 %v214, %v212
    %v255 = vpack.c.b16 %v215, %v213
    %v256 = vpack.c.b16 %v218, %v216
    %v257 = vpack.c.b16 %v219, %v217
    %v258 = vpack.c.b16 %v222, %v220
    %v259 = vpack.c.b16 %v223, %v221
    %v260 = vpack.c.b16 %v226, %v224
    %v261 = vpack.c.b16 %v227, %v225
    %v262 = vpack.c.b16 %v230, %v228
    %v263 = vpack.c.b16 %v231, %v229
    %296 = vmatpush.bf16.msra.mxu0 %v246
    %297 = vmatpush.bf16.msra.mxu0 %v244
    %298 = vmatpush.bf16.msra.mxu0 %v242
    %299 = vmatpush.bf16.msra.mxu0 %v240
    %300 = vmatpush.bf16.msra.mxu0 %v238
    %301 = vmatpush.bf16.msra.mxu0 %v236
    %302 = vmatpush.bf16.msra.mxu0 %v234
    %303 = vmatpush.bf16.msra.mxu0 %v232
    %304 = vmatmul.bf16.gmra.mxu0 %v96
    %v305 = vpop.f32.mrf.mxu0
    %v306 = vadd.f32 %v132, %v305
    %v307 = vpop.f32.mrf.mxu0
    %308 = vdwg.mxu0
    %309 = vmatpush.bf16.msra.mxu0 %v262
    %310 = vmatpush.bf16.msra.mxu0 %v260
    %311 = vmatpush.bf16.msra.mxu0 %v258
    %312 = vmatpush.bf16.msra.mxu0 %v256
    %313 = vmatpush.bf16.msra.mxu0 %v254
    %314 = vmatpush.bf16.msra.mxu0 %v252
    %315 = vmatpush.bf16.msra.mxu0 %v250
    %316 = vmatpush.bf16.msra.mxu0 %v248
    %317 = vmatmul.bf16.gmra.mxu0 %v97
    %v318 = vpop.f32.mrf.mxu0
    %v319 = vadd.f32 %v306, %v318
    %v320 = vpop.f32.mrf.mxu0
    %321 = vdwg.mxu0
    %322 = vmatpush.bf16.msra.mxu0 %v247
    %323 = vmatpush.bf16.msra.mxu0 %v245
    %324 = vmatpush.bf16.msra.mxu0 %v243
    %325 = vmatpush.bf16.msra.mxu0 %v241
    %326 = vmatpush.bf16.msra.mxu0 %v239
    %327 = vmatpush.bf16.msra.mxu0 %v237
    %328 = vmatpush.bf16.msra.mxu0 %v235
    %329 = vmatpush.bf16.msra.mxu0 %v233
    %330 = vmatmul.bf16.gmra.mxu0 %v96
    %v331 = vpop.f32.mrf.mxu0
    %v332 = vadd.f32 %v133, %v331
    %v333 = vpop.f32.mrf.mxu0
    %334 = vdwg.mxu0
    %335 = vmatpush.bf16.msra.mxu0 %v263
    %336 = vmatpush.bf16.msra.mxu0 %v261
    %337 = vmatpush.bf16.msra.mxu0 %v259
    %338 = vmatpush.bf16.msra.mxu0 %v257
    %339 = vmatpush.bf16.msra.mxu0 %v255
    %340 = vmatpush.bf16.msra.mxu0 %v253
    %341 = vmatpush.bf16.msra.mxu0 %v251
    %342 = vmatpush.bf16.msra.mxu0 %v249
    %343 = vmatmul.bf16.gmra.mxu0 %v97
    %v344 = vpop.f32.mrf.mxu0
    %v345 = vadd.f32 %v332, %v344
    %v346 = vpop.f32.mrf.mxu0
    %347 = vdwg.mxu0
    %v348 = vmax.f32 %v319, 0.0
    %v349 = vmax.f32 %v345, 0.0
    %v350 = vpack.c.bf16 %v348, %v348
    %v351 = vpack.c.bf16 %v349, %v349
    %v352 = vld [vmem:[%s5] sm:$0xf]
    %v353 = vld [vmem:[%s5 + $0x4] sm:$0xf]
    %v354 = vld [vmem:[%s5 + $0x8] sm:$0xf]
    %v355 = vld [vmem:[%s5 + $0xc] sm:$0xf]
    %v356 = vld [vmem:[%s5 + $0x10] sm:$0xf]
    %v357 = vld [vmem:[%s5 + $0x14] sm:$0xf]
    %v358 = vld [vmem:[%s5 + $0x18] sm:$0xf]
    %v359 = vld [vmem:[%s5 + $0x1c] sm:$0xf]
    %v360 = vld [vmem:[%s5 + $0x20] sm:$0xf]
    %v361 = vld [vmem:[%s5 + $0x24] sm:$0xf]
    %v362 = vld [vmem:[%s5 + $0x28] sm:$0xf]
    %v363 = vld [vmem:[%s5 + $0x2c] sm:$0xf]
    %v364 = vld [vmem:[%s5 + $0x30] sm:$0xf]
    %v365 = vld [vmem:[%s5 + $0x34] sm:$0xf]
    %v366 = vld [vmem:[%s5 + $0x38] sm:$0xf]
    %v367 = vld [vmem:[%s5 + $0x3c] sm:$0xf]
    %v368 = vld [vmem:[%s5 + $0x40] sm:$0xf]
    %v369 = vld [vmem:[%s5 + $0x44] sm:$0xf]
    %v370 = vld [vmem:[%s5 + $0x48] sm:$0xf]
    %v371 = vld [vmem:[%s5 + $0x4c] sm:$0xf]
    %v372 = vld [vmem:[%s5 + $0x50] sm:$0xf]
    %v373 = vld [vmem:[%s5 + $0x54] sm:$0xf]
    %v374 = vld [vmem:[%s5 + $0x58] sm:$0xf]
    %v375 = vld [vmem:[%s5 + $0x5c] sm:$0xf]
    %v376 = vld [vmem:[%s5 + $0x60] sm:$0xf]
    %v377 = vld [vmem:[%s5 + $0x64] sm:$0xf]
    %v378 = vld [vmem:[%s5 + $0x68] sm:$0xf]
    %v379 = vld [vmem:[%s5 + $0x6c] sm:$0xf]
    %v380 = vld [vmem:[%s5 + $0x70] sm:$0xf]
    %v381 = vld [vmem:[%s5 + $0x74] sm:$0xf]
    %v382 = vld [vmem:[%s5 + $0x78] sm:$0xf]
    %v383 = vld [vmem:[%s5 + $0x7c] sm:$0xf]
    %v384 = vld [vmem:[%s6] sm:$0x1]
    %v386 = vperm.slane %v384, 0
    %v420 = vunpack.c.l.b16 %v352
    %v421 = vunpack.c.l.b16 %v353
    %v422 = vunpack.c.l.b16 %v354
    %v423 = vunpack.c.l.b16 %v355
    %v424 = vunpack.c.l.b16 %v356
    %v425 = vunpack.c.l.b16 %v357
    %v426 = vunpack.c.l.b16 %v358
    %v427 = vunpack.c.l.b16 %v359
    %v428 = vunpack.c.l.b16 %v360
    %v429 = vunpack.c.l.b16 %v361
    %v430 = vunpack.c.l.b16 %v362
    %v431 = vunpack.c.l.b16 %v363
    %v432 = vunpack.c.l.b16 %v364
    %v433 = vunpack.c.l.b16 %v365
    %v434 = vunpack.c.l.b16 %v366
    %v435 = vunpack.c.l.b16 %v367
    %v436 = vunpack.c.l.b16 %v368
    %v437 = vunpack.c.l.b16 %v369
    %v438 = vunpack.c.l.b16 %v370
    %v439 = vunpack.c.l.b16 %v371
    %v440 = vunpack.c.l.b16 %v372
    %v441 = vunpack.c.l.b16 %v373
    %v442 = vunpack.c.l.b16 %v374
    %v443 = vunpack.c.l.b16 %v375
    %v444 = vunpack.c.l.b16 %v376
    %v445 = vunpack.c.l.b16 %v377
    %v446 = vunpack.c.l.b16 %v378
    %v447 = vunpack.c.l.b16 %v379
    %v448 = vunpack.c.l.b16 %v380
    %v449 = vunpack.c.l.b16 %v381
    %v450 = vunpack.c.l.b16 %v382
    %v451 = vunpack.c.l.b16 %v383
    %v452 = vpack.c.b16 %v421, %v420
    %v453 = vpack.c.b16 %v423, %v422
    %v454 = vpack.c.b16 %v425, %v424
    %v455 = vpack.c.b16 %v427, %v426
    %v456 = vpack.c.b16 %v429, %v428
    %v457 = vpack.c.b16 %v431, %v430
    %v458 = vpack.c.b16 %v433, %v432
    %v459 = vpack.c.b16 %v435, %v434
    %v460 = vpack.c.b16 %v437, %v436
    %v461 = vpack.c.b16 %v439, %v438
    %v462 = vpack.c.b16 %v441, %v440
    %v463 = vpack.c.b16 %v443, %v442
    %v464 = vpack.c.b16 %v445, %v444
    %v465 = vpack.c.b16 %v447, %v446
    %v466 = vpack.c.b16 %v449, %v448
    %v467 = vpack.c.b16 %v451, %v450
    %484 = vmatpush.bf16.msra.mxu0 %v459
    %485 = vmatpush.bf16.msra.mxu0 %v458
    %486 = vmatpush.bf16.msra.mxu0 %v457
    %487 = vmatpush.bf16.msra.mxu0 %v456
    %488 = vmatpush.bf16.msra.mxu0 %v455
    %489 = vmatpush.bf16.msra.mxu0 %v454
    %490 = vmatpush.bf16.msra.mxu0 %v453
    %491 = vmatpush.bf16.msra.mxu0 %v452
    %492 = vmatmul.bf16.gmra.mxu0 %v350
    %v493 = vpop.f32.mrf.mxu0
    %v494 = vadd.f32 %v386, %v493
    %v495 = vpop.f32.mrf.mxu0
    %496 = vdwg.mxu0
    %497 = vmatpush.bf16.msra.mxu0 %v467
    %498 = vmatpush.bf16.msra.mxu0 %v466
    %499 = vmatpush.bf16.msra.mxu0 %v465
    %500 = vmatpush.bf16.msra.mxu0 %v464
    %501 = vmatpush.bf16.msra.mxu0 %v463
    %502 = vmatpush.bf16.msra.mxu0 %v462
    %503 = vmatpush.bf16.msra.mxu0 %v461
    %504 = vmatpush.bf16.msra.mxu0 %v460
    %505 = vmatmul.bf16.gmra.mxu0 %v351
    %v506 = vpop.f32.mrf.mxu0
    %v507 = vadd.f32 %v494, %v506
    %v508 = vpop.f32.mrf.mxu0
    %509 = vdwg.mxu0
    %vm510 = vcmask 58368
    %511 = vst.msk [vmem:[#allocation5] sm:$0x3] %vm510, %v507
    // Predicated region
    $region34: #{skill_discriminator_forward.1} parent=1 // pred_check
      _
    $region35: #{skill_discriminator_forward.1} parent=1 // pred_check_branch
      %513 = sbr.rel (0) target = $region37
    $region36: #{skill_discriminator_forward.1} parent=1 // pred_region
      %515 = vsyncadd [#allocation4], 0
      %s517 = sshll.u32 [#allocation5], 4
      %s518 = int_to_ptr.vmem [resolvable:$true] %s517
      %s519 = sshll.u32 %s7, 4
      %s520 = int_to_ptr.hbm [resolvable:$true] %s519
      %522 = dma.vmem_to_hbm [thread:$0]  %s518, 32, %s520, [#allocation4]
    $region37: #{skill_discriminator_forward.1} parent=1 // pred_fallthru
      _
    // Predicated region
    $region38: #{skill_discriminator_forward.1} parent=1 // pred_check
      _
    $region39: #{skill_discriminator_forward.1} parent=1 // pred_check_branch
      %524 = sbr.rel (0) target = $region41
    $region40: #{skill_discriminator_forward.1} parent=1 // pred_region
      %526 = dma.done [#allocation4], 32
    $region41: #{skill_discriminator_forward.1} parent=1 // pred_fallthru
      _
    %527 = vsyncpa [#allocation3], 1
    %528 = vsyncpa [#allocation4], 1

</llo_original>
